<compile_context>
chip_gen: v6e
topology: v6e:2x2x1
jax: 0.10.0
libtpu: 0.0.40
codegen_flags: <defaults>
</compile_context>

<pallas_src>
import functools

import numpy as np

import jax
import jax.numpy as jnp
from jax.experimental import pallas as pl
from jax.experimental.pallas import tpu as pltpu

KERNEL_HEIGHTS = (3, 5, 7)          # CNNprojection kernel heights
LANE = 128
VMEM_BUDGET_BYTES = 48 * 2**20      # cap: safe on v7x (64 MiB/TC), fine on v5e/v6e


def _round_up(x, m):
    return (x + m - 1) // m * m


# --------------------------------------------------------------------------- #
# Kernel                                                                      #
# --------------------------------------------------------------------------- #
def _bert_wce_cnn_kernel(x_ref, wconv_ref, cconst_ref, wout_ref, out_ref):
    """One batch block: im2col conv (single MXU matmul) + masked max-pool + folded FC."""
    bblk, seq, emb = x_ref.shape
    k_fused, c_pad = wconv_ref.shape
    h_max = k_fused // emb                        # == max(KERNEL_HEIGHTS)
    cdt = wconv_ref.dtype                         # MXU operand dtype (f32 or bf16)
    n_rows = bblk * seq

    # Build the im2col LHS in f32 (dtype-simple rolls/concat), cast once for the MXU.
    x2d = x_ref[...].astype(jnp.float32).reshape(n_rows, emb)
    taps = [x2d]
    for k in range(1, h_max):
        # roll(-k): row t now holds x[t + k].  Wrapped rows (incl. cross-batch
        # leakage from the flattened roll) only reach time positions that are
        # invalid for every kernel height using tap k and are masked below.
        taps.append(pltpu.roll(x2d, shift=n_rows - k, axis=0))
    im2col = jnp.concatenate(taps, axis=-1).astype(cdt)        # (bblk*seq, h_max*emb)

    # Whole 3-branch convolution as ONE matmul (zero taps/channels are padding).
    y = jnp.dot(im2col, wconv_ref[...], preferred_element_type=jnp.float32)
    y = y.reshape(bblk, seq, c_pad)

    mask = cconst_ref[0:seq, :]                                # (seq, c_pad) 0/1 f32
    bias = cconst_ref[seq:seq + 1, :]                          # (1,  c_pad)  f32
    # Invariant: ReLU >= 0, so zeroing invalid / wrapped positions is safe
    # before the max-pool.  Any change of activation breaks this.
    act = jnp.maximum(y + bias[None, :, :], 0.0) * mask[None, :, :]
    pooled = jnp.max(act, axis=1)                              # (bblk, c_pad)

    # Folded (projection-Linear @ label-Linear); dropout is identity in eval mode.
    w_out = wout_ref[0:c_pad, :]                               # (c_pad, o_pad) f32
    b_out = wout_ref[c_pad:c_pad + 1, :]                       # (1,     o_pad) f32
    out_ref[...] = (jnp.dot(pooled, w_out, preferred_element_type=jnp.float32)
                    + b_out)


# --------------------------------------------------------------------------- #
# Parameter packing                                                           #
# --------------------------------------------------------------------------- #
def pack_params(params, seq, compute_dtype=jnp.float32):
    """Pack all kernel constants.

    Returns (kparams, meta):
      w_conv     : (h_max*emb, c_pad)  fused im2col conv weight (compute dtype)
      conv_const : (seq+1, c_pad) f32  rows [0:seq] = time/channel validity mask,
                                       row  [seq]   = conv bias
      w_out      : (c_pad+1, o_pad) f32 rows [0:c_pad] = folded (proj @ label)
                                        weight, row [c_pad] = folded bias
    The two FC layers are folded offline because dropout is identity in eval mode
    and there is no activation between them (exact up to f32 rounding).
    """
    c = params[f'b{KERNEL_HEIGHTS[0]}'].shape[-1]
    emb = params[f'w{KERNEL_HEIGHTS[0]}'].shape[1]
    h_max = max(KERNEL_HEIGHTS)
    c_cat = len(KERNEL_HEIGHTS) * c
    out_size = params['bl'].shape[0]
    c_pad = _round_up(c_cat, LANE)
    o_pad = _round_up(out_size, LANE)
    k_fused = h_max * emb
    assert seq >= h_max, 'sequence shorter than the widest conv kernel'

    w_conv = np.zeros((k_fused, c_pad), np.float32)
    conv_const = np.zeros((seq + 1, c_pad), np.float32)
    for b_idx, h in enumerate(KERNEL_HEIGHTS):
        col = b_idx * c
        w_h = np.asarray(params[f'w{h}'], np.float32)          # (h, emb, c)
        for k in range(h):                                     # taps k>=h stay zero
            w_conv[k * emb:(k + 1) * emb, col:col + c] = w_h[k]
        conv_const[:seq - h + 1, col:col + c] = 1.0            # validity mask
        conv_const[seq, col:col + c] = np.asarray(params[f'b{h}'], np.float32)

    # Fold projection Linear (3C -> hidden) with label Linear (hidden -> out).
    wfc = np.asarray(params['wfc'], np.float32)
    bfc = np.asarray(params['bfc'], np.float32)
    wl = np.asarray(params['wl'], np.float32)
    bl = np.asarray(params['bl'], np.float32)
    w_fold = wfc @ wl                                          # (c_cat, out_size)
    b_fold = bfc @ wl + bl                                     # (out_size,)
    w_out = np.zeros((c_pad + 1, o_pad), np.float32)
    w_out[:c_cat, :out_size] = w_fold
    w_out[c_pad, :out_size] = b_fold

    kparams = dict(
        w_conv=jnp.asarray(w_conv, compute_dtype),
        conv_const=jnp.asarray(conv_const),     # mask + bias: f32 epilogue
        w_out=jnp.asarray(w_out),               # tiny final matmul stays f32
    )
    meta = dict(c=c, c_cat=c_cat, c_pad=c_pad, o_pad=o_pad, out_size=out_size,
                k_fused=k_fused, emb=emb, seq=seq)
    return kparams, meta


# --------------------------------------------------------------------------- #
# Host wrapper                                                                #
# --------------------------------------------------------------------------- #
def _per_block_bytes(bblk, seq, emb, k_fused, c_pad, o_pad, x_item, w_bytes):
    """Rough VMEM footprint of one grid step (double-buffered tiles + temporaries)."""
    x_tile = bblk * seq * emb * x_item
    out_tile = bblk * o_pad * 4
    im2col = bblk * seq * (emb * 4 + k_fused * (4 + x_item))   # x2d + taps + cast
    conv_tmp = 3 * bblk * seq * c_pad * 4                      # y / act / headroom
    return 2 * (x_tile + out_tile) + 2 * w_bytes + im2col + conv_tmp


def _pick_batch_block(batch, requested, per_block_bytes_fn):
    """Largest divisor of batch that is a multiple of 8 (or == batch), capped at the
    request, at batch//2 (keep >= 2 grid steps so v7x's two TensorCores both get
    work), and validated against the VMEM budget."""
    req = max(1, min(requested, batch))
    if batch >= 16:
        req = min(req, batch // 2)
    candidates = [d for d in range(req, 0, -1)
                  if batch % d == 0 and (d % 8 == 0 or d == batch)]
    for d in candidates:
        if per_block_bytes_fn(d) <= VMEM_BUDGET_BYTES:
            return d
    return candidates[-1] if candidates else batch


def bert_wce_classifier_forward(bert_emb, wce_emb, kparams, meta, *, block_b=128):
    """Batch-tiled Pallas forward.  Returns (B, output_size) f32 logits."""
    batch, seq, d_bert = bert_emb.shape
    d_wce = wce_emb.shape[2]
    emb = d_bert + d_wce
    assert emb == meta['emb'] and seq == meta['seq'], 'pack_params seq/emb mismatch'
    cdt = kparams['w_conv'].dtype
    x_item = jnp.dtype(cdt).itemsize
    c_pad, o_pad, out_size, k_fused = (meta['c_pad'], meta['o_pad'],
                                       meta['out_size'], meta['k_fused'])

    # Single host-side concat (tiny XLA copy) so the in-kernel contraction runs at
    # full embedding depth.  bf16 operands halve x HBM traffic on every generation
    # (v5e/v6e/v7x MXUs all take bf16; the epilogue stays f32).
    x = jnp.concatenate([bert_emb, wce_emb], axis=-1).astype(cdt)

    weight_args = (kparams['w_conv'], kparams['conv_const'], kparams['w_out'])
    w_bytes = sum(int(w.size) * w.dtype.itemsize for w in weight_args)

    per_block = functools.partial(_per_block_bytes, seq=seq, emb=emb,
                                  k_fused=k_fused, c_pad=c_pad, o_pad=o_pad,
                                  x_item=x_item, w_bytes=w_bytes)
    bblk = _pick_batch_block(batch, block_b, per_block)
    grid = (batch // bblk,)

    # Constant index_maps: weights are DMA'd once and stay VMEM-resident across
    # grid steps.  TODO(synk): pipeline_mode=pl.Buffered(1) would also drop their
    # (small) second buffer.
    in_specs = [pl.BlockSpec((bblk, seq, emb), lambda i: (i, 0, 0)),
                pl.BlockSpec(kparams['w_conv'].shape, lambda i: (0, 0)),
                pl.BlockSpec(kparams['conv_const'].shape, lambda i: (0, 0)),
                pl.BlockSpec(kparams['w_out'].shape, lambda i: (0, 0))]
    out_specs = pl.BlockSpec((bblk, o_pad), lambda i: (i, 0))

    # Advisory cost: count only the useful (non-padded) MACs.
    c = meta['c']
    conv_flops = sum(2 * batch * (seq - h + 1) * h * emb * c for h in KERNEL_HEIGHTS)
    fc_flops = 2 * batch * meta['c_cat'] * out_size
    bytes_accessed = int(x.size) * x_item + w_bytes + batch * o_pad * 4
    cost = pl.CostEstimate(flops=int(conv_flops + fc_flops), transcendentals=0,
                           bytes_accessed=int(bytes_accessed))

    vmem_limit = int(min(VMEM_BUDGET_BYTES, max(16 * 2**20, 2 * per_block(bblk))))

    out_padded = pl.pallas_call(
        _bert_wce_cnn_kernel,
        out_shape=jax.ShapeDtypeStruct((batch, o_pad), jnp.float32),
        grid_spec=pltpu.PrefetchScalarGridSpec(
            num_scalar_prefetch=0,
            grid=grid,
            in_specs=in_specs,
            out_specs=out_specs),
        compiler_params=pltpu.CompilerParams(
            dimension_semantics=("parallel",),      # batch across v7x's 2 TCs
            vmem_limit_bytes=vmem_limit),
        cost_estimate=cost,
    )(x, *weight_args)
    return out_padded[:, :out_size]


# --------------------------------------------------------------------------- #
# Parameter init + pure-JAX reference (original per-branch / two-Linear math) #
# --------------------------------------------------------------------------- #
def _xavier_uniform(key, shape, fan_in, fan_out):
    bound = jnp.sqrt(6.0 / (fan_in + fan_out))
    return jax.random.uniform(key, shape, jnp.float32, -bound, bound)


def init_params(key, d_bert, d_wce, out_channels, hidden_size, output_size):
    """Raw per-branch parameters (same layout as the PyTorch module, transposed)."""
    emb = d_bert + d_wce
    keys = jax.random.split(key, 10)
    params = {}
    for i, h in enumerate(KERNEL_HEIGHTS):
        params[f'w{h}'] = _xavier_uniform(keys[2 * i], (h, emb, out_channels),
                                          fan_in=h * emb, fan_out=out_channels)
        params[f'b{h}'] = 0.05 * jax.random.normal(keys[2 * i + 1],
                                                   (out_channels,), jnp.float32)
    cat = len(KERNEL_HEIGHTS) * out_channels
    params['wfc'] = _xavier_uniform(keys[6], (cat, hidden_size), cat, hidden_size)
    params['bfc'] = 0.05 * jax.random.normal(keys[7], (hidden_size,), jnp.float32)
    params['wl'] = _xavier_uniform(keys[8], (hidden_size, output_size),
                                   hidden_size, output_size)
    params['bl'] = 0.05 * jax.random.normal(keys[9], (output_size,), jnp.float32)
    return params


def reference_forward(bert_emb, wce_emb, params):
    """Pure-JAX reference with the original per-branch conv and unfused FC layers."""
    x = jnp.concatenate([bert_emb, wce_emb], axis=-1)
    seq = x.shape[1]
    pooled = []
    for h in KERNEL_HEIGHTS:
        w, b = params[f'w{h}'], params[f'b{h}']
        length = seq - h + 1
        acc = sum(jnp.einsum('ble,ec->blc', x[:, k:k + length, :], w[k])
                  for k in range(h))
        act = jnp.maximum(acc + b[None, None, :], 0.0)
        pooled.append(jnp.max(act, axis=1))
    all_out = jnp.concatenate(pooled, axis=-1)
    doc = all_out @ params['wfc'] + params['bfc'][None, :]     # dropout = identity (eval)
    return doc @ params['wl'] + params['bl'][None, :]


if __name__ == "__main__":
    B, S = 16, 16                    # batch tiled as 2 parallel grid steps of 8
    D_BERT, D_WCE = 24, 8            # emb_dim = 32 -> im2col contraction K = 7*32 = 224
    OUT_CHANNELS = 16                # 3C = 48 conv channels -> 128 lanes
    HIDDEN = 32                      # projection.dim() (folded away offline)
    OUTPUT = 8                       # number of classes (padded to 128 lanes)

    key = jax.random.PRNGKey(0)
    k_bert, k_wce, k_params = jax.random.split(key, 3)
    bert_emb = jax.random.normal(k_bert, (B, S, D_BERT), jnp.float32)
    wce_emb = jax.random.normal(k_wce, (B, S, D_WCE), jnp.float32)
    params = init_params(k_params, D_BERT, D_WCE, OUT_CHANNELS, HIDDEN, OUTPUT)

    ref = reference_forward(bert_emb, wce_emb, params)

    # f32 MXU operands (exactness path, every generation).
    kp32, meta32 = pack_params(params, S, jnp.float32)
    out32 = jax.block_until_ready(
        bert_wce_classifier_forward(bert_emb, wce_emb, kp32, meta32, block_b=128))
    assert out32.shape == (B, OUTPUT)
    assert jnp.allclose(out32, ref, atol=1e-2, rtol=1e-2), 'f32 kernel mismatch vs reference'

    # bf16 MXU operands, f32 accumulate/epilogue (fast path on v5e / v6e / v7x).
    kp16, meta16 = pack_params(params, S, jnp.bfloat16)
    out16 = jax.block_until_ready(
        bert_wce_classifier_forward(bert_emb, wce_emb, kp16, meta16, block_b=128))
    assert out16.shape == (B, OUTPUT)
    assert jnp.allclose(out16, ref, atol=2e-1, rtol=5e-2), 'bf16 kernel mismatch vs reference'

    print("KERNEL_OK")
</pallas_src>

<mosaic_0001>
module attributes {stable_mosaic.version = 11 : i64} {
  func.func @_bert_wce_cnn_kernel(%arg0: i32, %arg1: memref<8x16x32xf32, #tpu.memory_space<vmem>>, %arg2: memref<224x128xf32, #tpu.memory_space<vmem>>, %arg3: memref<17x128xf32, #tpu.memory_space<vmem>>, %arg4: memref<129x128xf32, #tpu.memory_space<vmem>>, %arg5: memref<8x128xf32, #tpu.memory_space<vmem>>) attributes {dimension_semantics = [#tpu.dimension_semantics<parallel>], iteration_bounds = array<i64: 2>, scalar_prefetch = 0 : i64, scratch_operands = 0 : i64, tpu.core_type = #tpu.core_type<tc>, window_params = [{transform_indices = @transform_0, window_bounds = array<i64: 8, 16, 32>}, {pipeline_mode = #tpu.pipeline_mode<synchronous>, transform_indices = @transform_1, window_bounds = array<i64: 224, 128>}, {pipeline_mode = #tpu.pipeline_mode<synchronous>, transform_indices = @transform_2, window_bounds = array<i64: 17, 128>}, {pipeline_mode = #tpu.pipeline_mode<synchronous>, transform_indices = @transform_3, window_bounds = array<i64: 129, 128>}, {transform_indices = @transform_4, window_bounds = array<i64: 8, 128>}]} {
    %c0 = arith.constant 0 : index
    %c0_0 = arith.constant 0 : index
    %c0_1 = arith.constant 0 : index
    %0 = vector.load %arg1[%c0, %c0_0, %c0_1] : memref<8x16x32xf32, #tpu.memory_space<vmem>>, vector<8x16x32xf32>
    %1 = vector.shape_cast %0 : vector<8x16x32xf32> to vector<128x32xf32>
    %c127_i32 = arith.constant 127 : i32
    %2 = tpu.dynamic_rotate %1 by %c127_i32 dim 0 : vector<128x32xf32>, i32 -> vector<128x32xf32>
    %c126_i32 = arith.constant 126 : i32
    %3 = tpu.dynamic_rotate %1 by %c126_i32 dim 0 : vector<128x32xf32>, i32 -> vector<128x32xf32>
    %c125_i32 = arith.constant 125 : i32
    %4 = tpu.dynamic_rotate %1 by %c125_i32 dim 0 : vector<128x32xf32>, i32 -> vector<128x32xf32>
    %c124_i32 = arith.constant 124 : i32
    %5 = tpu.dynamic_rotate %1 by %c124_i32 dim 0 : vector<128x32xf32>, i32 -> vector<128x32xf32>
    %c123_i32 = arith.constant 123 : i32
    %6 = tpu.dynamic_rotate %1 by %c123_i32 dim 0 : vector<128x32xf32>, i32 -> vector<128x32xf32>
    %c122_i32 = arith.constant 122 : i32
    %7 = tpu.dynamic_rotate %1 by %c122_i32 dim 0 : vector<128x32xf32>, i32 -> vector<128x32xf32>
    %8 = tpu.concatenate %1, %2, %3, %4, %5, %6, %7 in 1 : vector<128x32xf32>, vector<128x32xf32>, vector<128x32xf32>, vector<128x32xf32>, vector<128x32xf32>, vector<128x32xf32>, vector<128x32xf32> -> vector<128x224xf32>
    %c0_2 = arith.constant 0 : index
    %c0_3 = arith.constant 0 : index
    %9 = vector.load %arg2[%c0_2, %c0_3] : memref<224x128xf32, #tpu.memory_space<vmem>>, vector<224x128xf32>
    %cst = arith.constant dense<0.000000e+00> : vector<128x128xf32>
    %10 = tpu.matmul %8, %9, %cst {dimension_numbers = #tpu.dot_dimension_numbers<[1], [0], [0], [1], [0, 0, 1, 1], [], []>} : vector<128x224xf32>, vector<224x128xf32>, vector<128x128xf32> -> vector<128x128xf32>
    %11 = vector.shape_cast %10 : vector<128x128xf32> to vector<8x16x128xf32>
    %c0_4 = arith.constant 0 : index
    %c0_5 = arith.constant 0 : index
    %12 = vector.load %arg3[%c0_4, %c0_5] : memref<17x128xf32, #tpu.memory_space<vmem>>, vector<16x128xf32>
    %c16 = arith.constant 16 : index
    %c0_6 = arith.constant 0 : index
    %13 = vector.load %arg3[%c16, %c0_6] : memref<17x128xf32, #tpu.memory_space<vmem>>, vector<1x128xf32>
    %14 = vector.shape_cast %13 : vector<1x128xf32> to vector<1x1x128xf32>
    %15 = vector.broadcast %14 : vector<1x1x128xf32> to vector<8x16x128xf32>
    %16 = arith.addf %11, %15 : vector<8x16x128xf32>
    %cst_7 = arith.constant 0.000000e+00 : f32
    %17 = vector.broadcast %cst_7 : f32 to vector<8x16x128xf32>
    %18 = arith.maximumf %16, %17 : vector<8x16x128xf32>
    %19 = vector.shape_cast %12 : vector<16x128xf32> to vector<1x16x128xf32>
    %20 = vector.broadcast %19 : vector<1x16x128xf32> to vector<8x16x128xf32>
    %21 = arith.mulf %18, %20 : vector<8x16x128xf32>
    %cst_8 = arith.constant dense<0xFF800000> : vector<8x128xf32>
    %22 = vector.multi_reduction <maximumf>, %21, %cst_8 [1] : vector<8x16x128xf32> to vector<8x128xf32>
    %c0_9 = arith.constant 0 : index
    %c0_10 = arith.constant 0 : index
    %23 = vector.load %arg4[%c0_9, %c0_10] : memref<129x128xf32, #tpu.memory_space<vmem>>, vector<128x128xf32>
    %c128 = arith.constant 128 : index
    %c0_11 = arith.constant 0 : index
    %24 = vector.load %arg4[%c128, %c0_11] : memref<129x128xf32, #tpu.memory_space<vmem>>, vector<1x128xf32>
    %cst_12 = arith.constant dense<0.000000e+00> : vector<8x128xf32>
    %25 = tpu.matmul %22, %23, %cst_12 {dimension_numbers = #tpu.dot_dimension_numbers<[1], [0], [0], [1], [0, 0, 1, 1], [], []>} : vector<8x128xf32>, vector<128x128xf32>, vector<8x128xf32> -> vector<8x128xf32>
    %26 = vector.broadcast %24 : vector<1x128xf32> to vector<8x128xf32>
    %27 = arith.addf %25, %26 : vector<8x128xf32>
    %c0_13 = arith.constant 0 : index
    %c0_14 = arith.constant 0 : index
    %28 = vector.load %arg5[%c0_13, %c0_14] : memref<8x128xf32, #tpu.memory_space<vmem>>, vector<8x128xf32>
    tpu.vector_store %arg5[%c0_13, %c0_14], %27 {strides = array<i32>} : memref<8x128xf32, #tpu.memory_space<vmem>>, vector<8x128xf32>,
    return
  }
  func.func @transform_0(%arg0: i32) -> (i32, i32, i32) {
    %c0_i32 = arith.constant 0 : i32
    %c0_i32_0 = arith.constant 0 : i32
    %c0_i32_1 = arith.constant 0 : i32
    return %arg0, %c0_i32, %c0_i32_0 : i32, i32, i32
  }
  func.func @transform_1(%arg0: i32) -> (i32, i32) {
    %c0_i32 = arith.constant 0 : i32
    %c0_i32_0 = arith.constant 0 : i32
    %c0_i32_1 = arith.constant 0 : i32
    return %c0_i32, %c0_i32_0 : i32, i32
  }
  func.func @transform_2(%arg0: i32) -> (i32, i32) {
    %c0_i32 = arith.constant 0 : i32
    %c0_i32_0 = arith.constant 0 : i32
    %c0_i32_1 = arith.constant 0 : i32
    return %c0_i32, %c0_i32_0 : i32, i32
  }
  func.func @transform_3(%arg0: i32) -> (i32, i32) {
    %c0_i32 = arith.constant 0 : i32
    %c0_i32_0 = arith.constant 0 : i32
    %c0_i32_1 = arith.constant 0 : i32
    return %c0_i32, %c0_i32_0 : i32, i32
  }
  func.func @transform_4(%arg0: i32) -> (i32, i32) {
    %c0_i32 = arith.constant 0 : i32
    %c0_i32_0 = arith.constant 0 : i32
    return %arg0, %c0_i32 : i32, i32
  }
}

</mosaic_0001>

<llo_original>
// kernel: tpu_custom_call.1
$region0: #{tpu_custom_call.1}
  #allocation0 [shape = 'u32[]', space=smem, size = 0x4, offset = 0x4, fixed_abs, tag = 'smem constant byte address 0x4 - core index']
  #allocation1 [shape = 'u32[144,128]{1,0:T(1,128)}', space=vmem, size = 0x12000, scoped, tag = 'internal scratch']
  %s0 = inlined_call_operand.hbm [shape: f32[16,16,32], index: 0, kind: input, shape index: {}]
  %s1 = inlined_call_operand.hbm [shape: f32[224,128], index: 1, kind: input, shape index: {}]
  %s2 = inlined_call_operand.hbm [shape: f32[17,128], index: 2, kind: input, shape index: {}]
  %s3 = inlined_call_operand.hbm [shape: f32[129,128], index: 3, kind: input, shape index: {}]
  %s4 = inlined_call_operand.hbm [shape: f32[16,128], index: 4, kind: output, shape index: {}]
  %s5 = sld [smem:[#allocation0]]
  $region65: #{tpu_custom_call.1} parent=0
    _
  %s7 = ssub.s32 1, %s5
  %s8 = scalar_select 0, %s7, %s5
  $region1: #{tpu_custom_call.1} parent=0
    #allocation2 [shape = 'u8[131072]{0}', space=vmem, size = 0x20000, scoped, tag = 'input window, operand 0']
    #allocation3 [shape = 's32[2]{0}', space=sflag, size = 0x8, scoped, tag = 'scoped memory for tpu_custom_call.1']
    #allocation4 [shape = 's32[2]{0}', space=sflag, size = 0x8, scoped, tag = 'scoped memory for tpu_custom_call.1']
    #allocation5 [shape = 'u8[114688]{0}', space=vmem, size = 0x1c000, scoped, tag = 'input window, operand 1, single buffered']
    #allocation6 [shape = 's32[1]{0}', space=sflag, size = 0x4, scoped, tag = 'scoped memory for tpu_custom_call.1']
    #allocation7 [shape = 'u8[12288]{0}', space=vmem, size = 0x3000, scoped, tag = 'input window, operand 2, single buffered']
    #allocation8 [shape = 'u8[69632]{0}', space=vmem, size = 0x11000, scoped, tag = 'input window, operand 3, single buffered']
    #allocation9 [shape = 's32[1]{0}', space=sflag, size = 0x4, scoped, tag = 'scoped memory for tpu_custom_call.1']
    #allocation10 [shape = 'u8[8192]{0}', space=vmem, size = 0x2000, scoped, tag = 'output window, operand 0']
    %9 = vsyncpa [#allocation3], 0
    %s10 = scalar_lea.sflag [#allocation3], 1
    %11 = vsyncpa %s10, 0
    %12 = vsyncpa [#allocation6], 0
    %13 = vsyncpa [#allocation9], 0
    %14 = vsyncpa [#allocation4], 0
    %s15 = scalar_lea.sflag [#allocation4], 1
    %16 = vsyncpa %s15, 0
    loop: start=0, step=1, limit=4
    $region2: #{tpu_custom_call.1} parent=1 // loop_pre_header
      _
    $region3: #{tpu_custom_call.1} parent=1 // loop_header
      %s18 = sphi 0, %s22
      %p19 = scmp.ge.s32.totalorder %s18, 4
      %s28 = sphi 0, %s30
      %s31 = sphi 0, %s28
      %s32 = sphi 0, %s31
      %s48 = sphi 0, %s32
      %s52 = sphi 0, %s52
      %s54 = sphi 0, %s52
      %s55 = sphi 0, %s54
      %s69 = sphi 0, %s55
      %s73 = sphi 0, %s73
      %s75 = sphi 0, %s73
      %s76 = sphi 0, %s75
      %s90 = sphi 0, %s76
      %s94 = sphi 0, %s94
      %s96 = sphi 0, %s94
      %s97 = sphi 0, %s96
      %s111 = sphi 0, %s97
      %s117 = sphi 0, %s119
      %s120 = sphi 0, %s117
      %s121 = sphi 0, %s120
      %s137 = sphi 0, %s121
    $region4: #{tpu_custom_call.1} parent=1 // loop_header_branch
      %21 = sbr.rel (%p19) target = $region8
    $region5: #{tpu_custom_call.1} parent=1 // loop_body
      %s23 = ssub.s32 %s18, 1
      %s24 = ssub.s32 %s18, 2
      %s25 = sadd.s32 %s18, 1
      %s26 = ssub.s32 %s18, %s25
      %p27 = scmp.eq.s32.totalorder %s26, 0
      %s29 = sadd.s32 %s28, 1
      %s30 = scalar_select %p27, %s28, %s29
      %p33 = pneg %p27
      %p34 = scmp.eq.s32.totalorder %s18, 1
      %p35 = por %p33, %p34
      %p36 = scmp.ne.s32.totalorder %s28, %s31
      %p37 = scmp.eq.s32.totalorder %s18, 0
      %p38 = por %p36, %p37
      %p39 = scmp.ne.s32.totalorder %s28, %s31
      %p40 = scmp.eq.s32.totalorder %s23, 1
      %p41 = por %p39, %p40
      %p42 = scmp.ne.s32.totalorder %s31, %s32
      %p43 = scmp.eq.s32.totalorder %s23, 0
      %p44 = por %p42, %p43
      %p45 = scmp.ne.s32.totalorder %s31, %s32
      %p46 = scmp.eq.s32.totalorder %s24, 1
      %p47 = por %p45, %p46
      %p49 = scmp.ne.s32.totalorder %s32, %s48
      %p50 = scmp.eq.s32.totalorder %s24, 0
      %p51 = por %p49, %p50
      %s53 = sadd.s32 %s52, 1
      %p56 = scmp.eq.s32.totalorder %s18, 1
      %p57 = scmp.ne.s32.totalorder %s52, %s54
      %p58 = scmp.eq.s32.totalorder %s18, 0
      %p59 = por %p57, %p58
      %p60 = scmp.ne.s32.totalorder %s52, %s54
      %p61 = scmp.eq.s32.totalorder %s23, 1
      %p62 = por %p60, %p61
      %p63 = scmp.ne.s32.totalorder %s54, %s55
      %p64 = scmp.eq.s32.totalorder %s23, 0
      %p65 = por %p63, %p64
      %p66 = scmp.ne.s32.totalorder %s54, %s55
      %p67 = scmp.eq.s32.totalorder %s24, 1
      %p68 = por %p66, %p67
      %p70 = scmp.ne.s32.totalorder %s55, %s69
      %p71 = scmp.eq.s32.totalorder %s24, 0
      %p72 = por %p70, %p71
      %s74 = sadd.s32 %s73, 1
      %p77 = scmp.eq.s32.totalorder %s18, 1
      %p78 = scmp.ne.s32.totalorder %s73, %s75
      %p79 = scmp.eq.s32.totalorder %s18, 0
      %p80 = por %p78, %p79
      %p81 = scmp.ne.s32.totalorder %s73, %s75
      %p82 = scmp.eq.s32.totalorder %s23, 1
      %p83 = por %p81, %p82
      %p84 = scmp.ne.s32.totalorder %s75, %s76
      %p85 = scmp.eq.s32.totalorder %s23, 0
      %p86 = por %p84, %p85
      %p87 = scmp.ne.s32.totalorder %s75, %s76
      %p88 = scmp.eq.s32.totalorder %s24, 1
      %p89 = por %p87, %p88
      %p91 = scmp.ne.s32.totalorder %s76, %s90
      %p92 = scmp.eq.s32.totalorder %s24, 0
      %p93 = por %p91, %p92
      %s95 = sadd.s32 %s94, 1
      %p98 = scmp.eq.s32.totalorder %s18, 1
      %p99 = scmp.ne.s32.totalorder %s94, %s96
      %p100 = scmp.eq.s32.totalorder %s18, 0
      %p101 = por %p99, %p100
      %p102 = scmp.ne.s32.totalorder %s94, %s96
      %p103 = scmp.eq.s32.totalorder %s23, 1
      %p104 = por %p102, %p103
      %p105 = scmp.ne.s32.totalorder %s96, %s97
      %p106 = scmp.eq.s32.totalorder %s23, 0
      %p107 = por %p105, %p106
      %p108 = scmp.ne.s32.totalorder %s96, %s97
      %p109 = scmp.eq.s32.totalorder %s24, 1
      %p110 = por %p108, %p109
      %p112 = scmp.ne.s32.totalorder %s97, %s111
      %p113 = scmp.eq.s32.totalorder %s24, 0
      %p114 = por %p112, %p113
      %s115 = ssub.s32 %s18, %s25
      %p116 = scmp.eq.s32.totalorder %s115, 0
      %s118 = sadd.s32 %s117, 1
      %s119 = scalar_select %p116, %s117, %s118
      %p122 = pneg %p116
      %p123 = scmp.eq.s32.totalorder %s18, 1
      %p124 = por %p122, %p123
      %p125 = scmp.ne.s32.totalorder %s117, %s120
      %p126 = scmp.eq.s32.totalorder %s18, 0
      %p127 = por %p125, %p126
      %p128 = scmp.ne.s32.totalorder %s117, %s120
      %p129 = scmp.eq.s32.totalorder %s23, 1
      %p130 = por %p128, %p129
      %p131 = scmp.ne.s32.totalorder %s120, %s121
      %p132 = scmp.eq.s32.totalorder %s23, 0
      %p133 = por %p131, %p132
      %p134 = scmp.ne.s32.totalorder %s120, %s121
      %p135 = scmp.eq.s32.totalorder %s24, 1
      %p136 = por %p134, %p135
      %p138 = scmp.ne.s32.totalorder %s121, %s137
      %p139 = scmp.eq.s32.totalorder %s24, 0
      %p140 = por %p138, %p139
      %p141 = scmp.le.s32.totalorder 1, %s18
      %p142 = scmp.lt.s32.totalorder %s18, 3
      %p143 = pnand %p141, %p142
      %p144 = pneg %p143
      // Predicated region
      $region9: #{tpu_custom_call.1} parent=5 // pred_check
        _
      $region10: #{tpu_custom_call.1} parent=5 // pred_check_branch
        %146 = sbr.rel (%p143) target = $region12
      $region11: #{tpu_custom_call.1} parent=5 // pred_region
        %s147 = ssub.s32 %s18, 1
        // Predicated region
        $region13: #{tpu_custom_call.1} parent=11 // pred_check
          %p148 = pneg %p65
        $region14: #{tpu_custom_call.1} parent=11 // pred_check_branch
          %150 = sbr.rel (%p148) target = $region16
        $region15: #{tpu_custom_call.1} parent=11 // pred_region
          %s152 = ssub.s32 3584, 3584
          %153 = vsyncadd [#allocation6], %s152
          %s154 = sshll.u32 [#allocation5], 4
          %s155 = int_to_ptr.vmem [resolvable:$true] %s154
          %160 = dma.hbm_to_vmem [thread:$0]  %s1, 3584, %s155, [#allocation6], 128, 128, 8
        $region16: #{tpu_custom_call.1} parent=11 // pred_fallthru
          _
        // Predicated region
        $region17: #{tpu_custom_call.1} parent=11 // pred_check
          %p161 = pneg %p86
        $region18: #{tpu_custom_call.1} parent=11 // pred_check_branch
          %163 = sbr.rel (%p161) target = $region20
        $region19: #{tpu_custom_call.1} parent=11 // pred_region
          %s165 = ssub.s32 384, 384
          %166 = vsyncadd [#allocation6], %s165
          %s167 = sshll.u32 [#allocation7], 4
          %s168 = int_to_ptr.vmem [resolvable:$true] %s167
          %173 = dma.hbm_to_vmem [thread:$0]  %s2, 384, %s168, [#allocation6], 128, 128, 8
        $region20: #{tpu_custom_call.1} parent=11 // pred_fallthru
          _
        // Predicated region
        $region21: #{tpu_custom_call.1} parent=11 // pred_check
          %p174 = pneg %p107
        $region22: #{tpu_custom_call.1} parent=11 // pred_check_branch
          %176 = sbr.rel (%p174) target = $region24
        $region23: #{tpu_custom_call.1} parent=11 // pred_region
          %s178 = ssub.s32 2176, 2176
          %179 = vsyncadd [#allocation9], %s178
          %s180 = sshll.u32 [#allocation8], 4
          %s181 = int_to_ptr.vmem [resolvable:$true] %s180
          %186 = dma.hbm_to_vmem [thread:$0]  %s3, 2176, %s181, [#allocation9], 128, 128, 8
        $region24: #{tpu_custom_call.1} parent=11 // pred_fallthru
          _
      $region12: #{tpu_custom_call.1} parent=5 // pred_fallthru
        _
      %p187 = scmp.lt.s32.totalorder %s18, 2
      // Predicated region
      $region25: #{tpu_custom_call.1} parent=5 // pred_check
        %p188 = pneg %p187
      $region26: #{tpu_custom_call.1} parent=5 // pred_check_branch
        %190 = sbr.rel (%p188) target = $region28
      $region27: #{tpu_custom_call.1} parent=5 // pred_region
        // Predicated region
        $region29: #{tpu_custom_call.1} parent=27 // pred_check
          %p191 = pneg %p38
        $region30: #{tpu_custom_call.1} parent=27 // pred_check_branch
          %193 = sbr.rel (%p191) target = $region32
        $region31: #{tpu_custom_call.1} parent=27 // pred_region
          %s194 = sand.u32 %s28, 1
          %s195 = scalar_lea.sflag [#allocation3], %s194
          %s196 = sand.u32 %s28, 1
          %s197 = smul.addr %s196, 128
          %s198 = scalar_lea.vmem [#allocation2], %s197
          %s199 = smul.u32 8, %s18
          %s201 = ssub.s32 2048, 2048
          %202 = vsyncadd %s195, %s201
          %s203 = smul.addr %s199, 2
          %s204 = smul.addr %s203, 128
          %s205 = scalar_lea.hbm %s0, %s204
          %s206 = sshll.u32 %s198, 4
          %s207 = int_to_ptr.vmem [resolvable:$true] %s206
          %212 = dma.hbm_to_vmem [thread:$0]  %s205, 2048, %s207, %s195, 128, 128, 8
        $region32: #{tpu_custom_call.1} parent=27 // pred_fallthru
          _
      $region28: #{tpu_custom_call.1} parent=5 // pred_fallthru
        _
      %p213 = scmp.le.s32.totalorder 1, %s18
      %p214 = scmp.lt.s32.totalorder %s18, 3
      %p215 = pnand %p213, %p214
      %p216 = pneg %p215
      // Predicated region
      $region33: #{tpu_custom_call.1} parent=5 // pred_check
        _
      $region34: #{tpu_custom_call.1} parent=5 // pred_check_branch
        %218 = sbr.rel (%p215) target = $region36
      $region35: #{tpu_custom_call.1} parent=5 // pred_region
        %s219 = ssub.s32 %s18, 1
        %s220 = sand.u32 %s31, 1
        %s221 = scalar_lea.sflag [#allocation3], %s220
        %s222 = sand.u32 %s31, 1
        %s223 = smul.addr %s222, 128
        %s224 = scalar_lea.vmem [#allocation2], %s223
        // Predicated region
        $region37: #{tpu_custom_call.1} parent=35 // pred_check
          %p225 = pneg %p44
        $region38: #{tpu_custom_call.1} parent=35 // pred_check_branch
          %227 = sbr.rel (%p225) target = $region40
        $region39: #{tpu_custom_call.1} parent=35 // pred_region
          %228 = dma.done %s221, 2048
        $region40: #{tpu_custom_call.1} parent=35 // pred_fallthru
          _
        // Predicated region
        $region41: #{tpu_custom_call.1} parent=35 // pred_check
          %p229 = pneg %p65
        $region42: #{tpu_custom_call.1} parent=35 // pred_check_branch
          %231 = sbr.rel (%p229) target = $region44
        $region43: #{tpu_custom_call.1} parent=35 // pred_region
          %232 = dma.done [#allocation6], 3584
        $region44: #{tpu_custom_call.1} parent=35 // pred_fallthru
          _
        // Predicated region
        $region45: #{tpu_custom_call.1} parent=35 // pred_check
          %p233 = pneg %p86
        $region46: #{tpu_custom_call.1} parent=35 // pred_check_branch
          %235 = sbr.rel (%p233) target = $region48
        $region47: #{tpu_custom_call.1} parent=35 // pred_region
          %236 = dma.done [#allocation6], 384
        $region48: #{tpu_custom_call.1} parent=35 // pred_fallthru
          _
        // Predicated region
        $region49: #{tpu_custom_call.1} parent=35 // pred_check
          %p237 = pneg %p107
        $region50: #{tpu_custom_call.1} parent=35 // pred_check_branch
          %239 = sbr.rel (%p237) target = $region52
        $region51: #{tpu_custom_call.1} parent=35 // pred_region
          %240 = dma.done [#allocation9], 2176
        $region52: #{tpu_custom_call.1} parent=35 // pred_fallthru
          _
        %s241 = sand.u32 %s31, 1
        %s242 = scalar_lea.sflag [#allocation3], %s241
        %s243 = sand.u32 %s31, 1
        %s244 = smul.addr %s243, 128
        %s245 = scalar_lea.vmem [#allocation2], %s244
        %p246 = pneg %p44
        %p247 = pneg %p41
        %p248 = pneg %p65
        %p249 = pneg %p62
        %p250 = pneg %p86
        %p251 = pneg %p83
        %p252 = pneg %p107
        %p253 = pneg %p104
        %p254 = pneg %p133
        %p255 = pneg %p130
        %s256 = sand.u32 %s120, 1
        %s257 = scalar_lea.sflag [#allocation4], %s256
        %s258 = sand.u32 %s120, 1
        %s259 = smul.addr %s258, 8
        %s260 = scalar_lea.vmem [#allocation10], %s259
        %s261 = smul.u32 8, %s23
        %v262 = vld [vmem:[%s224] sm:$0xff]
        %v263 = vld [vmem:[%s224 + $0x8] sm:$0xff]
        %v264 = vld [vmem:[%s224 + $0x10] sm:$0xff]
        %v265 = vld [vmem:[%s224 + $0x18] sm:$0xff]
        %v266 = vld [vmem:[%s224 + $0x20] sm:$0xff]
        %v267 = vld [vmem:[%s224 + $0x28] sm:$0xff]
        %v268 = vld [vmem:[%s224 + $0x30] sm:$0xff]
        %v269 = vld [vmem:[%s224 + $0x38] sm:$0xff]
        %v270 = vld [vmem:[%s224 + $0x40] sm:$0xff]
        %v271 = vld [vmem:[%s224 + $0x48] sm:$0xff]
        %v272 = vld [vmem:[%s224 + $0x50] sm:$0xff]
        %v273 = vld [vmem:[%s224 + $0x58] sm:$0xff]
        %v274 = vld [vmem:[%s224 + $0x60] sm:$0xff]
        %v275 = vld [vmem:[%s224 + $0x68] sm:$0xff]
        %v276 = vld [vmem:[%s224 + $0x70] sm:$0xff]
        %v277 = vld [vmem:[%s224 + $0x78] sm:$0xff]
        %v278 = vrot.slane %v262, 1
        %v279 = vrot.slane %v263, 1
        %v280 = vrot.slane %v264, 1
        %v281 = vrot.slane %v265, 1
        %v282 = vrot.slane %v266, 1
        %v283 = vrot.slane %v267, 1
        %v284 = vrot.slane %v268, 1
        %v285 = vrot.slane %v269, 1
        %v286 = vrot.slane %v270, 1
        %v287 = vrot.slane %v271, 1
        %v288 = vrot.slane %v272, 1
        %v289 = vrot.slane %v273, 1
        %v290 = vrot.slane %v274, 1
        %v291 = vrot.slane %v275, 1
        %v292 = vrot.slane %v276, 1
        %v293 = vrot.slane %v277, 1
        %v294 = vlaneseq
        %v295 = vshrl.u32 %v294, 7
        %vm296 = vcmp.lt.s32.totalorder %v295, 7
        %v297 = vsel %vm296, %v292, %v293
        %v298 = vsel %vm296, %v291, %v292
        %v299 = vsel %vm296, %v290, %v291
        %v300 = vsel %vm296, %v289, %v290
        %v301 = vsel %vm296, %v288, %v289
        %v302 = vsel %vm296, %v287, %v288
        %v303 = vsel %vm296, %v286, %v287
        %v304 = vsel %vm296, %v285, %v286
        %v305 = vsel %vm296, %v284, %v285
        %v306 = vsel %vm296, %v283, %v284
        %v307 = vsel %vm296, %v282, %v283
        %v308 = vsel %vm296, %v281, %v282
        %v309 = vsel %vm296, %v280, %v281
        %v310 = vsel %vm296, %v279, %v280
        %v311 = vsel %vm296, %v278, %v279
        %v312 = vsel %vm296, %v293, %v278
        %v313 = vrot.slane %v262, 2
        %v314 = vrot.slane %v263, 2
        %v315 = vrot.slane %v264, 2
        %v316 = vrot.slane %v265, 2
        %v317 = vrot.slane %v266, 2
        %v318 = vrot.slane %v267, 2
        %v319 = vrot.slane %v268, 2
        %v320 = vrot.slane %v269, 2
        %v321 = vrot.slane %v270, 2
        %v322 = vrot.slane %v271, 2
        %v323 = vrot.slane %v272, 2
        %v324 = vrot.slane %v273, 2
        %v325 = vrot.slane %v274, 2
        %v326 = vrot.slane %v275, 2
        %v327 = vrot.slane %v276, 2
        %v328 = vrot.slane %v277, 2
        %vm329 = vcmp.lt.s32.totalorder %v295, 6
        %v330 = vsel %vm329, %v327, %v328
        %v331 = vsel %vm329, %v326, %v327
        %v332 = vsel %vm329, %v325, %v326
        %v333 = vsel %vm329, %v324, %v325
        %v334 = vsel %vm329, %v323, %v324
        %v335 = vsel %vm329, %v322, %v323
        %v336 = vsel %vm329, %v321, %v322
        %v337 = vsel %vm329, %v320, %v321
        %v338 = vsel %vm329, %v319, %v320
        %v339 = vsel %vm329, %v318, %v319
        %v340 = vsel %vm329, %v317, %v318
        %v341 = vsel %vm329, %v316, %v317
        %v342 = vsel %vm329, %v315, %v316
        %v343 = vsel %vm329, %v314, %v315
        %v344 = vsel %vm329, %v313, %v314
        %v345 = vsel %vm329, %v328, %v313
        %v346 = vrot.slane %v262, 3
        %v347 = vrot.slane %v263, 3
        %v348 = vrot.slane %v264, 3
        %v349 = vrot.slane %v265, 3
        %v350 = vrot.slane %v266, 3
        %v351 = vrot.slane %v267, 3
        %v352 = vrot.slane %v268, 3
        %v353 = vrot.slane %v269, 3
        %v354 = vrot.slane %v270, 3
        %v355 = vrot.slane %v271, 3
        %v356 = vrot.slane %v272, 3
        %v357 = vrot.slane %v273, 3
        %v358 = vrot.slane %v274, 3
        %v359 = vrot.slane %v275, 3
        %v360 = vrot.slane %v276, 3
        %v361 = vrot.slane %v277, 3
        %vm362 = vcmp.lt.s32.totalorder %v295, 5
        %v363 = vsel %vm362, %v360, %v361
        %v364 = vsel %vm362, %v359, %v360
        %v365 = vsel %vm362, %v358, %v359
        %v366 = vsel %vm362, %v357, %v358
        %v367 = vsel %vm362, %v356, %v357
        %v368 = vsel %vm362, %v355, %v356
        %v369 = vsel %vm362, %v354, %v355
        %v370 = vsel %vm362, %v353, %v354
        %v371 = vsel %vm362, %v352, %v353
        %v372 = vsel %vm362, %v351, %v352
        %v373 = vsel %vm362, %v350, %v351
        %v374 = vsel %vm362, %v349, %v350
        %v375 = vsel %vm362, %v348, %v349
        %v376 = vsel %vm362, %v347, %v348
        %v377 = vsel %vm362, %v346, %v347
        %v378 = vsel %vm362, %v361, %v346
        %v379 = vrot.slane %v262, 4
        %v380 = vrot.slane %v263, 4
        %v381 = vrot.slane %v264, 4
        %v382 = vrot.slane %v265, 4
        %v383 = vrot.slane %v266, 4
        %v384 = vrot.slane %v267, 4
        %v385 = vrot.slane %v268, 4
        %v386 = vrot.slane %v269, 4
        %v387 = vrot.slane %v270, 4
        %v388 = vrot.slane %v271, 4
        %v389 = vrot.slane %v272, 4
        %v390 = vrot.slane %v273, 4
        %v391 = vrot.slane %v274, 4
        %v392 = vrot.slane %v275, 4
        %v393 = vrot.slane %v276, 4
        %v394 = vrot.slane %v277, 4
        %vm395 = vcmp.lt.s32.totalorder %v295, 4
        %v396 = vsel %vm395, %v393, %v394
        %v397 = vsel %vm395, %v392, %v393
        %v398 = vsel %vm395, %v391, %v392
        %v399 = vsel %vm395, %v390, %v391
        %v400 = vsel %vm395, %v389, %v390
        %v401 = vsel %vm395, %v388, %v389
        %v402 = vsel %vm395, %v387, %v388
        %v403 = vsel %vm395, %v386, %v387
        %v404 = vsel %vm395, %v385, %v386
        %v405 = vsel %vm395, %v384, %v385
        %v406 = vsel %vm395, %v383, %v384
        %v407 = vsel %vm395, %v382, %v383
        %v408 = vsel %vm395, %v381, %v382
        %v409 = vsel %vm395, %v380, %v381
        %v410 = vsel %vm395, %v379, %v380
        %v411 = vsel %vm395, %v394, %v379
        %v412 = vrot.slane %v262, 5
        %v413 = vrot.slane %v263, 5
        %v414 = vrot.slane %v264, 5
        %v415 = vrot.slane %v265, 5
        %v416 = vrot.slane %v266, 5
        %v417 = vrot.slane %v267, 5
        %v418 = vrot.slane %v268, 5
        %v419 = vrot.slane %v269, 5
        %v420 = vrot.slane %v270, 5
        %v421 = vrot.slane %v271, 5
        %v422 = vrot.slane %v272, 5
        %v423 = vrot.slane %v273, 5
        %v424 = vrot.slane %v274, 5
        %v425 = vrot.slane %v275, 5
        %v426 = vrot.slane %v276, 5
        %v427 = vrot.slane %v277, 5
        %vm428 = vcmp.lt.s32.totalorder %v295, 3
        %v429 = vsel %vm428, %v426, %v427
        %v430 = vsel %vm428, %v425, %v426
        %v431 = vsel %vm428, %v424, %v425
        %v432 = vsel %vm428, %v423, %v424
        %v433 = vsel %vm428, %v422, %v423
        %v434 = vsel %vm428, %v421, %v422
        %v435 = vsel %vm428, %v420, %v421
        %v436 = vsel %vm428, %v419, %v420
        %v437 = vsel %vm428, %v418, %v419
        %v438 = vsel %vm428, %v417, %v418
        %v439 = vsel %vm428, %v416, %v417
        %v440 = vsel %vm428, %v415, %v416
        %v441 = vsel %vm428, %v414, %v415
        %v442 = vsel %vm428, %v413, %v414
        %v443 = vsel %vm428, %v412, %v413
        %v444 = vsel %vm428, %v427, %v412
        %v445 = vrot.slane %v262, 6
        %v446 = vrot.slane %v263, 6
        %v447 = vrot.slane %v264, 6
        %v448 = vrot.slane %v265, 6
        %v449 = vrot.slane %v266, 6
        %v450 = vrot.slane %v267, 6
        %v451 = vrot.slane %v268, 6
        %v452 = vrot.slane %v269, 6
        %v453 = vrot.slane %v270, 6
        %v454 = vrot.slane %v271, 6
        %v455 = vrot.slane %v272, 6
        %v456 = vrot.slane %v273, 6
        %v457 = vrot.slane %v274, 6
        %v458 = vrot.slane %v275, 6
        %v459 = vrot.slane %v276, 6
        %v460 = vrot.slane %v277, 6
        %vm461 = vcmp.lt.s32.totalorder %v295, 2
        %v462 = vsel %vm461, %v459, %v460
        %v463 = vsel %vm461, %v458, %v459
        %v464 = vsel %vm461, %v457, %v458
        %v465 = vsel %vm461, %v456, %v457
        %v466 = vsel %vm461, %v455, %v456
        %v467 = vsel %vm461, %v454, %v455
        %v468 = vsel %vm461, %v453, %v454
        %v469 = vsel %vm461, %v452, %v453
        %v470 = vsel %vm461, %v451, %v452
        %v471 = vsel %vm461, %v450, %v451
        %v472 = vsel %vm461, %v449, %v450
        %v473 = vsel %vm461, %v448, %v449
        %v474 = vsel %vm461, %v447, %v448
        %v475 = vsel %vm461, %v446, %v447
        %v476 = vsel %vm461, %v445, %v446
        %v477 = vsel %vm461, %v460, %v445
        %494 = vrot.lane.b32.xlu0 %v311, 32
        %v495 = vpop.permute.xlu0 %494
        %496 = vrot.lane.b32.xlu0 %v310, 32
        %v497 = vpop.permute.xlu0 %496
        %498 = vrot.lane.b32.xlu0 %v309, 32
        %v499 = vpop.permute.xlu0 %498
        %500 = vrot.lane.b32.xlu0 %v308, 32
        %v501 = vpop.permute.xlu0 %500
        %502 = vrot.lane.b32.xlu0 %v307, 32
        %v503 = vpop.permute.xlu0 %502
        %504 = vrot.lane.b32.xlu0 %v306, 32
        %v505 = vpop.permute.xlu0 %504
        %506 = vrot.lane.b32.xlu0 %v305, 32
        %v507 = vpop.permute.xlu0 %506
        %508 = vrot.lane.b32.xlu0 %v304, 32
        %v509 = vpop.permute.xlu0 %508
        %510 = vrot.lane.b32.xlu0 %v303, 32
        %v511 = vpop.permute.xlu0 %510
        %512 = vrot.lane.b32.xlu0 %v302, 32
        %v513 = vpop.permute.xlu0 %512
        %514 = vrot.lane.b32.xlu0 %v301, 32
        %v515 = vpop.permute.xlu0 %514
        %516 = vrot.lane.b32.xlu0 %v300, 32
        %v517 = vpop.permute.xlu0 %516
        %518 = vrot.lane.b32.xlu0 %v299, 32
        %v519 = vpop.permute.xlu0 %518
        %520 = vrot.lane.b32.xlu0 %v298, 32
        %v521 = vpop.permute.xlu0 %520
        %522 = vrot.lane.b32.xlu0 %v297, 32
        %v523 = vpop.permute.xlu0 %522
        %524 = vrot.lane.b32.xlu0 %v312, 32
        %v525 = vpop.permute.xlu0 %524
        %558 = vrot.lane.b32.xlu0 %v344, 64
        %v559 = vpop.permute.xlu0 %558
        %560 = vrot.lane.b32.xlu0 %v343, 64
        %v561 = vpop.permute.xlu0 %560
        %562 = vrot.lane.b32.xlu0 %v342, 64
        %v563 = vpop.permute.xlu0 %562
        %564 = vrot.lane.b32.xlu0 %v341, 64
        %v565 = vpop.permute.xlu0 %564
        %566 = vrot.lane.b32.xlu0 %v340, 64
        %v567 = vpop.permute.xlu0 %566
        %568 = vrot.lane.b32.xlu0 %v339, 64
        %v569 = vpop.permute.xlu0 %568
        %570 = vrot.lane.b32.xlu0 %v338, 64
        %v571 = vpop.permute.xlu0 %570
        %572 = vrot.lane.b32.xlu0 %v337, 64
        %v573 = vpop.permute.xlu0 %572
        %574 = vrot.lane.b32.xlu0 %v336, 64
        %v575 = vpop.permute.xlu0 %574
        %576 = vrot.lane.b32.xlu0 %v335, 64
        %v577 = vpop.permute.xlu0 %576
        %578 = vrot.lane.b32.xlu0 %v334, 64
        %v579 = vpop.permute.xlu0 %578
        %580 = vrot.lane.b32.xlu0 %v333, 64
        %v581 = vpop.permute.xlu0 %580
        %582 = vrot.lane.b32.xlu0 %v332, 64
        %v583 = vpop.permute.xlu0 %582
        %584 = vrot.lane.b32.xlu0 %v331, 64
        %v585 = vpop.permute.xlu0 %584
        %586 = vrot.lane.b32.xlu0 %v330, 64
        %v587 = vpop.permute.xlu0 %586
        %588 = vrot.lane.b32.xlu0 %v345, 64
        %v589 = vpop.permute.xlu0 %588
        %622 = vrot.lane.b32.xlu0 %v377, 96
        %v623 = vpop.permute.xlu0 %622
        %624 = vrot.lane.b32.xlu0 %v376, 96
        %v625 = vpop.permute.xlu0 %624
        %626 = vrot.lane.b32.xlu0 %v375, 96
        %v627 = vpop.permute.xlu0 %626
        %628 = vrot.lane.b32.xlu0 %v374, 96
        %v629 = vpop.permute.xlu0 %628
        %630 = vrot.lane.b32.xlu0 %v373, 96
        %v631 = vpop.permute.xlu0 %630
        %632 = vrot.lane.b32.xlu0 %v372, 96
        %v633 = vpop.permute.xlu0 %632
        %634 = vrot.lane.b32.xlu0 %v371, 96
        %v635 = vpop.permute.xlu0 %634
        %636 = vrot.lane.b32.xlu0 %v370, 96
        %v637 = vpop.permute.xlu0 %636
        %638 = vrot.lane.b32.xlu0 %v369, 96
        %v639 = vpop.permute.xlu0 %638
        %640 = vrot.lane.b32.xlu0 %v368, 96
        %v641 = vpop.permute.xlu0 %640
        %642 = vrot.lane.b32.xlu0 %v367, 96
        %v643 = vpop.permute.xlu0 %642
        %644 = vrot.lane.b32.xlu0 %v366, 96
        %v645 = vpop.permute.xlu0 %644
        %646 = vrot.lane.b32.xlu0 %v365, 96
        %v647 = vpop.permute.xlu0 %646
        %648 = vrot.lane.b32.xlu0 %v364, 96
        %v649 = vpop.permute.xlu0 %648
        %650 = vrot.lane.b32.xlu0 %v363, 96
        %v651 = vpop.permute.xlu0 %650
        %652 = vrot.lane.b32.xlu0 %v378, 96
        %v653 = vpop.permute.xlu0 %652
        %686 = vrot.lane.b32.xlu0 %v443, 32
        %v687 = vpop.permute.xlu0 %686
        %688 = vrot.lane.b32.xlu0 %v442, 32
        %v689 = vpop.permute.xlu0 %688
        %690 = vrot.lane.b32.xlu0 %v441, 32
        %v691 = vpop.permute.xlu0 %690
        %692 = vrot.lane.b32.xlu0 %v440, 32
        %v693 = vpop.permute.xlu0 %692
        %694 = vrot.lane.b32.xlu0 %v439, 32
        %v695 = vpop.permute.xlu0 %694
        %696 = vrot.lane.b32.xlu0 %v438, 32
        %v697 = vpop.permute.xlu0 %696
        %698 = vrot.lane.b32.xlu0 %v437, 32
        %v699 = vpop.permute.xlu0 %698
        %700 = vrot.lane.b32.xlu0 %v436, 32
        %v701 = vpop.permute.xlu0 %700
        %702 = vrot.lane.b32.xlu0 %v435, 32
        %v703 = vpop.permute.xlu0 %702
        %704 = vrot.lane.b32.xlu0 %v434, 32
        %v705 = vpop.permute.xlu0 %704
        %706 = vrot.lane.b32.xlu0 %v433, 32
        %v707 = vpop.permute.xlu0 %706
        %708 = vrot.lane.b32.xlu0 %v432, 32
        %v709 = vpop.permute.xlu0 %708
        %710 = vrot.lane.b32.xlu0 %v431, 32
        %v711 = vpop.permute.xlu0 %710
        %712 = vrot.lane.b32.xlu0 %v430, 32
        %v713 = vpop.permute.xlu0 %712
        %714 = vrot.lane.b32.xlu0 %v429, 32
        %v715 = vpop.permute.xlu0 %714
        %716 = vrot.lane.b32.xlu0 %v444, 32
        %v717 = vpop.permute.xlu0 %716
        %750 = vrot.lane.b32.xlu0 %v476, 64
        %v751 = vpop.permute.xlu0 %750
        %752 = vrot.lane.b32.xlu0 %v475, 64
        %v753 = vpop.permute.xlu0 %752
        %754 = vrot.lane.b32.xlu0 %v474, 64
        %v755 = vpop.permute.xlu0 %754
        %756 = vrot.lane.b32.xlu0 %v473, 64
        %v757 = vpop.permute.xlu0 %756
        %758 = vrot.lane.b32.xlu0 %v472, 64
        %v759 = vpop.permute.xlu0 %758
        %760 = vrot.lane.b32.xlu0 %v471, 64
        %v761 = vpop.permute.xlu0 %760
        %762 = vrot.lane.b32.xlu0 %v470, 64
        %v763 = vpop.permute.xlu0 %762
        %764 = vrot.lane.b32.xlu0 %v469, 64
        %v765 = vpop.permute.xlu0 %764
        %766 = vrot.lane.b32.xlu0 %v468, 64
        %v767 = vpop.permute.xlu0 %766
        %768 = vrot.lane.b32.xlu0 %v467, 64
        %v769 = vpop.permute.xlu0 %768
        %770 = vrot.lane.b32.xlu0 %v466, 64
        %v771 = vpop.permute.xlu0 %770
        %772 = vrot.lane.b32.xlu0 %v465, 64
        %v773 = vpop.permute.xlu0 %772
        %774 = vrot.lane.b32.xlu0 %v464, 64
        %v775 = vpop.permute.xlu0 %774
        %776 = vrot.lane.b32.xlu0 %v463, 64
        %v777 = vpop.permute.xlu0 %776
        %778 = vrot.lane.b32.xlu0 %v462, 64
        %v779 = vpop.permute.xlu0 %778
        %780 = vrot.lane.b32.xlu0 %v477, 64
        %v781 = vpop.permute.xlu0 %780
        %vm798 = vcmask 261120
        %v799 = vsel %vm798, %v262, %v495
        %v800 = vsel %vm798, %v263, %v497
        %v801 = vsel %vm798, %v264, %v499
        %v802 = vsel %vm798, %v265, %v501
        %v803 = vsel %vm798, %v266, %v503
        %v804 = vsel %vm798, %v267, %v505
        %v805 = vsel %vm798, %v268, %v507
        %v806 = vsel %vm798, %v269, %v509
        %v807 = vsel %vm798, %v270, %v511
        %v808 = vsel %vm798, %v271, %v513
        %v809 = vsel %vm798, %v272, %v515
        %v810 = vsel %vm798, %v273, %v517
        %v811 = vsel %vm798, %v274, %v519
        %v812 = vsel %vm798, %v275, %v521
        %v813 = vsel %vm798, %v276, %v523
        %v814 = vsel %vm798, %v277, %v525
        %vm815 = vcmask 523264
        %v816 = vsel %vm815, %v799, %v559
        %v817 = vsel %vm815, %v800, %v561
        %v818 = vsel %vm815, %v801, %v563
        %v819 = vsel %vm815, %v802, %v565
        %v820 = vsel %vm815, %v803, %v567
        %v821 = vsel %vm815, %v804, %v569
        %v822 = vsel %vm815, %v805, %v571
        %v823 = vsel %vm815, %v806, %v573
        %v824 = vsel %vm815, %v807, %v575
        %v825 = vsel %vm815, %v808, %v577
        %v826 = vsel %vm815, %v809, %v579
        %v827 = vsel %vm815, %v810, %v581
        %v828 = vsel %vm815, %v811, %v583
        %v829 = vsel %vm815, %v812, %v585
        %v830 = vsel %vm815, %v813, %v587
        %v831 = vsel %vm815, %v814, %v589
        %vm832 = vcmask 785408
        %v833 = vsel %vm832, %v816, %v623
        %v834 = vsel %vm832, %v817, %v625
        %v835 = vsel %vm832, %v818, %v627
        %v836 = vsel %vm832, %v819, %v629
        %v837 = vsel %vm832, %v820, %v631
        %v838 = vsel %vm832, %v821, %v633
        %v839 = vsel %vm832, %v822, %v635
        %v840 = vsel %vm832, %v823, %v637
        %v841 = vsel %vm832, %v824, %v639
        %v842 = vsel %vm832, %v825, %v641
        %v843 = vsel %vm832, %v826, %v643
        %v844 = vsel %vm832, %v827, %v645
        %v845 = vsel %vm832, %v828, %v647
        %v846 = vsel %vm832, %v829, %v649
        %v847 = vsel %vm832, %v830, %v651
        %v848 = vsel %vm832, %v831, %v653
        %v849 = vsel %vm798, %v410, %v687
        %v850 = vsel %vm798, %v409, %v689
        %v851 = vsel %vm798, %v408, %v691
        %v852 = vsel %vm798, %v407, %v693
        %v853 = vsel %vm798, %v406, %v695
        %v854 = vsel %vm798, %v405, %v697
        %v855 = vsel %vm798, %v404, %v699
        %v856 = vsel %vm798, %v403, %v701
        %v857 = vsel %vm798, %v402, %v703
        %v858 = vsel %vm798, %v401, %v705
        %v859 = vsel %vm798, %v400, %v707
        %v860 = vsel %vm798, %v399, %v709
        %v861 = vsel %vm798, %v398, %v711
        %v862 = vsel %vm798, %v397, %v713
        %v863 = vsel %vm798, %v396, %v715
        %v864 = vsel %vm798, %v411, %v717
        %v865 = vsel %vm815, %v849, %v751
        %v866 = vsel %vm815, %v850, %v753
        %v867 = vsel %vm815, %v851, %v755
        %v868 = vsel %vm815, %v852, %v757
        %v869 = vsel %vm815, %v853, %v759
        %v870 = vsel %vm815, %v854, %v761
        %v871 = vsel %vm815, %v855, %v763
        %v872 = vsel %vm815, %v856, %v765
        %v873 = vsel %vm815, %v857, %v767
        %v874 = vsel %vm815, %v858, %v769
        %v875 = vsel %vm815, %v859, %v771
        %v876 = vsel %vm815, %v860, %v773
        %v877 = vsel %vm815, %v861, %v775
        %v878 = vsel %vm815, %v862, %v777
        %v879 = vsel %vm815, %v863, %v779
        %v880 = vsel %vm815, %v864, %v781
        %v881 = vld [vmem:[#allocation5] sm:$0xff]
        %v882 = vld [vmem:[#allocation5 + $0x8] sm:$0xff]
        %v883 = vld [vmem:[#allocation5 + $0x10] sm:$0xff]
        %v884 = vld [vmem:[#allocation5 + $0x18] sm:$0xff]
        %v885 = vld [vmem:[#allocation5 + $0x20] sm:$0xff]
        %v886 = vld [vmem:[#allocation5 + $0x28] sm:$0xff]
        %v887 = vld [vmem:[#allocation5 + $0x30] sm:$0xff]
        %v888 = vld [vmem:[#allocation5 + $0x38] sm:$0xff]
        %v889 = vld [vmem:[#allocation5 + $0x40] sm:$0xff]
        %v890 = vld [vmem:[#allocation5 + $0x48] sm:$0xff]
        %v891 = vld [vmem:[#allocation5 + $0x50] sm:$0xff]
        %v892 = vld [vmem:[#allocation5 + $0x58] sm:$0xff]
        %v893 = vld [vmem:[#allocation5 + $0x60] sm:$0xff]
        %v894 = vld [vmem:[#allocation5 + $0x68] sm:$0xff]
        %v895 = vld [vmem:[#allocation5 + $0x70] sm:$0xff]
        %v896 = vld [vmem:[#allocation5 + $0x78] sm:$0xff]
        %v897 = vld [vmem:[#allocation5 + $0x80] sm:$0xff]
        %v898 = vld [vmem:[#allocation5 + $0x88] sm:$0xff]
        %v899 = vld [vmem:[#allocation5 + $0x90] sm:$0xff]
        %v900 = vld [vmem:[#allocation5 + $0x98] sm:$0xff]
        %v901 = vld [vmem:[#allocation5 + $0xa0] sm:$0xff]
        %v902 = vld [vmem:[#allocation5 + $0xa8] sm:$0xff]
        %v903 = vld [vmem:[#allocation5 + $0xb0] sm:$0xff]
        %v904 = vld [vmem:[#allocation5 + $0xb8] sm:$0xff]
        %v905 = vld [vmem:[#allocation5 + $0xc0] sm:$0xff]
        %v906 = vld [vmem:[#allocation5 + $0xc8] sm:$0xff]
        %v907 = vld [vmem:[#allocation5 + $0xd0] sm:$0xff]
        %v908 = vld [vmem:[#allocation5 + $0xd8] sm:$0xff]
        %v910 = vsel %vm832, %v865, 0
        %v913 = vsel %vm832, %v866, 0
        %v916 = vsel %vm832, %v867, 0
        %v919 = vsel %vm832, %v868, 0
        %v922 = vsel %vm832, %v869, 0
        %v925 = vsel %vm832, %v870, 0
        %v928 = vsel %vm832, %v871, 0
        %v931 = vsel %vm832, %v872, 0
        %v934 = vsel %vm832, %v873, 0
        %v937 = vsel %vm832, %v874, 0
        %v940 = vsel %vm832, %v875, 0
        %v943 = vsel %vm832, %v876, 0
        %v946 = vsel %vm832, %v877, 0
        %v949 = vsel %vm832, %v878, 0
        %v952 = vsel %vm832, %v879, 0
        %v955 = vsel %vm832, %v880, 0
        %957 = vmatprep.subr.mxu0 0.0
        %958 = vmatpush1.msra.mxu0 %v896
        %959 = vmatprep.subr.mxu0 0.0
        %960 = vmatpush1.msra.mxu0 %v895
        %961 = vmatprep.subr.mxu0 0.0
        %962 = vmatpush1.msra.mxu0 %v894
        %963 = vmatprep.subr.mxu0 0.0
        %964 = vmatpush1.msra.mxu0 %v893
        %965 = vmatprep.subr.mxu0 0.0
        %966 = vmatpush1.msra.mxu0 %v892
        %967 = vmatprep.subr.mxu0 0.0
        %968 = vmatpush1.msra.mxu0 %v891
        %969 = vmatprep.subr.mxu0 0.0
        %970 = vmatpush1.msra.mxu0 %v890
        %971 = vmatprep.subr.mxu0 0.0
        %972 = vmatpush1.msra.mxu0 %v889
        %973 = vmatprep.subr.mxu0 0.0
        %974 = vmatpush1.msra.mxu0 %v888
        %975 = vmatprep.subr.mxu0 0.0
        %976 = vmatpush1.msra.mxu0 %v887
        %977 = vmatprep.subr.mxu0 0.0
        %978 = vmatpush1.msra.mxu0 %v886
        %979 = vmatprep.subr.mxu0 0.0
        %980 = vmatpush1.msra.mxu0 %v885
        %981 = vmatprep.subr.mxu0 0.0
        %982 = vmatpush1.msra.mxu0 %v884
        %983 = vmatprep.subr.mxu0 0.0
        %984 = vmatpush1.msra.mxu0 %v883
        %985 = vmatprep.subr.mxu0 0.0
        %986 = vmatpush1.msra.mxu0 %v882
        %987 = vmatprep.subr.mxu0 0.0
        %988 = vmatpush1.msra.mxu0 %v881
        %989 = vmatprep.subr.mxu0 0.0
        %990 = vmatpush2.msra.mxu0 0.0
        %991 = vmatprep.subr.mxu0 0.0
        %992 = vmatpush2.msra.mxu0 0.0
        %993 = vmatprep.subr.mxu0 0.0
        %994 = vmatpush2.msra.mxu0 0.0
        %995 = vmatprep.subr.mxu0 0.0
        %996 = vmatpush2.msra.mxu0 0.0
        %997 = vmatprep.subr.mxu0 0.0
        %998 = vmatpush2.msra.mxu0 %v908
        %999 = vmatprep.subr.mxu0 0.0
        %1000 = vmatpush2.msra.mxu0 %v907
        %1001 = vmatprep.subr.mxu0 0.0
        %1002 = vmatpush2.msra.mxu0 %v906
        %1003 = vmatprep.subr.mxu0 0.0
        %1004 = vmatpush2.msra.mxu0 %v905
        %1005 = vmatprep.subr.mxu0 0.0
        %1006 = vmatpush2.msra.mxu0 %v904
        %1007 = vmatprep.subr.mxu0 0.0
        %1008 = vmatpush2.msra.mxu0 %v903
        %1009 = vmatprep.subr.mxu0 0.0
        %1010 = vmatpush2.msra.mxu0 %v902
        %1011 = vmatprep.subr.mxu0 0.0
        %1012 = vmatpush2.msra.mxu0 %v901
        %1013 = vmatprep.subr.mxu0 0.0
        %1014 = vmatpush2.msra.mxu0 %v900
        %1015 = vmatprep.subr.mxu0 0.0
        %1016 = vmatpush2.msra.mxu0 %v899
        %1017 = vmatprep.subr.mxu0 0.0
        %1018 = vmatpush2.msra.mxu0 %v898
        %1019 = vmatprep.subr.mxu0 0.0
        %1020 = vmatpush2.msra.mxu0 %v897
        %1021 = vmatprep.mubr.f32.mxu0 %v910
        %1022 = vmatmul.mubr.f32.gmra.mxu0 %v833
        %v1023 = vpop.f32.mrf.mxu0
        %v1024 = vadd.f32 0.0, %v1023
        %v1025 = vpop.f32.mrf.mxu0
        %1026 = vmatprep.mubr.f32.mxu0 %v913
        %1027 = vmatmul.mubr.f32.gmra.mxu0 %v834
        %v1028 = vpop.f32.mrf.mxu0
        %v1029 = vadd.f32 0.0, %v1028
        %v1030 = vpop.f32.mrf.mxu0
        %1031 = vmatprep.mubr.f32.mxu0 %v916
        %1032 = vmatmul.mubr.f32.gmra.mxu0 %v835
        %v1033 = vpop.f32.mrf.mxu0
        %v1034 = vadd.f32 0.0, %v1033
        %v1035 = vpop.f32.mrf.mxu0
        %1036 = vmatprep.mubr.f32.mxu0 %v919
        %1037 = vmatmul.mubr.f32.gmra.mxu0 %v836
        %v1038 = vpop.f32.mrf.mxu0
        %v1039 = vadd.f32 0.0, %v1038
        %v1040 = vpop.f32.mrf.mxu0
        %1041 = vmatprep.mubr.f32.mxu0 %v922
        %1042 = vmatmul.mubr.f32.gmra.mxu0 %v837
        %v1043 = vpop.f32.mrf.mxu0
        %v1044 = vadd.f32 0.0, %v1043
        %v1045 = vpop.f32.mrf.mxu0
        %1046 = vmatprep.mubr.f32.mxu0 %v925
        %1047 = vmatmul.mubr.f32.gmra.mxu0 %v838
        %v1048 = vpop.f32.mrf.mxu0
        %v1049 = vadd.f32 0.0, %v1048
        %v1050 = vpop.f32.mrf.mxu0
        %1051 = vmatprep.mubr.f32.mxu0 %v928
        %1052 = vmatmul.mubr.f32.gmra.mxu0 %v839
        %v1053 = vpop.f32.mrf.mxu0
        %v1054 = vadd.f32 0.0, %v1053
        %v1055 = vpop.f32.mrf.mxu0
        %1056 = vmatprep.mubr.f32.mxu0 %v931
        %1057 = vmatmul.mubr.f32.gmra.mxu0 %v840
        %v1058 = vpop.f32.mrf.mxu0
        %v1059 = vadd.f32 0.0, %v1058
        %v1060 = vpop.f32.mrf.mxu0
        %1061 = vmatprep.mubr.f32.mxu0 %v934
        %1062 = vmatmul.mubr.f32.gmra.mxu0 %v841
        %v1063 = vpop.f32.mrf.mxu0
        %v1064 = vadd.f32 0.0, %v1063
        %v1065 = vpop.f32.mrf.mxu0
        %1066 = vmatprep.mubr.f32.mxu0 %v937
        %1067 = vmatmul.mubr.f32.gmra.mxu0 %v842
        %v1068 = vpop.f32.mrf.mxu0
        %v1069 = vadd.f32 0.0, %v1068
        %v1070 = vpop.f32.mrf.mxu0
        %1071 = vmatprep.mubr.f32.mxu0 %v940
        %1072 = vmatmul.mubr.f32.gmra.mxu0 %v843
        %v1073 = vpop.f32.mrf.mxu0
        %v1074 = vadd.f32 0.0, %v1073
        %v1075 = vpop.f32.mrf.mxu0
        %1076 = vmatprep.mubr.f32.mxu0 %v943
        %1077 = vmatmul.mubr.f32.gmra.mxu0 %v844
        %v1078 = vpop.f32.mrf.mxu0
        %v1079 = vadd.f32 0.0, %v1078
        %v1080 = vpop.f32.mrf.mxu0
        %1081 = vmatprep.mubr.f32.mxu0 %v946
        %1082 = vmatmul.mubr.f32.gmra.mxu0 %v845
        %v1083 = vpop.f32.mrf.mxu0
        %v1084 = vadd.f32 0.0, %v1083
        %v1085 = vpop.f32.mrf.mxu0
        %1086 = vmatprep.mubr.f32.mxu0 %v949
        %1087 = vmatmul.mubr.f32.gmra.mxu0 %v846
        %v1088 = vpop.f32.mrf.mxu0
        %v1089 = vadd.f32 0.0, %v1088
        %v1090 = vpop.f32.mrf.mxu0
        %1091 = vmatprep.mubr.f32.mxu0 %v952
        %1092 = vmatmul.mubr.f32.gmra.mxu0 %v847
        %v1093 = vpop.f32.mrf.mxu0
        %v1094 = vadd.f32 0.0, %v1093
        %v1095 = vpop.f32.mrf.mxu0
        %1096 = vmatprep.mubr.f32.mxu0 %v955
        %1097 = vmatmul.mubr.f32.gmra.mxu0 %v848
        %v1098 = vpop.f32.mrf.mxu0
        %v1099 = vadd.f32 0.0, %v1098
        %v1100 = vpop.f32.mrf.mxu0
        %1101 = vdwg.mxu0
        %v1102 = vld [vmem:[#allocation7] sm:$0xff]
        %v1103 = vld [vmem:[#allocation7 + $0x8] sm:$0xff]
        %v1104 = vld [vmem:[#allocation7 + $0x10] sm:$0x1]
        %v1105 = vlaneseq
        %v1106 = vshrl.u32 %v1105, 7
        %v1107 = vsub.s32 0, %v1106
        %v1108 = vrot.slane %v1104, %v1107
        %v1109 = vadd.f32 %v1024, %v1108
        %v1110 = vadd.f32 %v1029, %v1108
        %v1111 = vadd.f32 %v1034, %v1108
        %v1112 = vadd.f32 %v1039, %v1108
        %v1113 = vadd.f32 %v1044, %v1108
        %v1114 = vadd.f32 %v1049, %v1108
        %v1115 = vadd.f32 %v1054, %v1108
        %v1116 = vadd.f32 %v1059, %v1108
        %v1117 = vadd.f32 %v1064, %v1108
        %v1118 = vadd.f32 %v1069, %v1108
        %v1119 = vadd.f32 %v1074, %v1108
        %v1120 = vadd.f32 %v1079, %v1108
        %v1121 = vadd.f32 %v1084, %v1108
        %v1122 = vadd.f32 %v1089, %v1108
        %v1123 = vadd.f32 %v1094, %v1108
        %v1124 = vadd.f32 %v1099, %v1108
        %v1125 = vmax.f32 %v1109, 0.0
        %v1126 = vmax.f32 %v1110, 0.0
        %v1127 = vmax.f32 %v1111, 0.0
        %v1128 = vmax.f32 %v1112, 0.0
        %v1129 = vmax.f32 %v1113, 0.0
        %v1130 = vmax.f32 %v1114, 0.0
        %v1131 = vmax.f32 %v1115, 0.0
        %v1132 = vmax.f32 %v1116, 0.0
        %v1133 = vmax.f32 %v1117, 0.0
        %v1134 = vmax.f32 %v1118, 0.0
        %v1135 = vmax.f32 %v1119, 0.0
        %v1136 = vmax.f32 %v1120, 0.0
        %v1137 = vmax.f32 %v1121, 0.0
        %v1138 = vmax.f32 %v1122, 0.0
        %v1139 = vmax.f32 %v1123, 0.0
        %v1140 = vmax.f32 %v1124, 0.0
        %v1141 = vmul.f32 %v1125, %v1102
        %v1142 = vmul.f32 %v1126, %v1103
        %v1143 = vmul.f32 %v1127, %v1102
        %v1144 = vmul.f32 %v1128, %v1103
        %v1145 = vmul.f32 %v1129, %v1102
        %v1146 = vmul.f32 %v1130, %v1103
        %v1147 = vmul.f32 %v1131, %v1102
        %v1148 = vmul.f32 %v1132, %v1103
        %v1149 = vmul.f32 %v1133, %v1102
        %v1150 = vmul.f32 %v1134, %v1103
        %v1151 = vmul.f32 %v1135, %v1102
        %v1152 = vmul.f32 %v1136, %v1103
        %v1153 = vmul.f32 %v1137, %v1102
        %v1154 = vmul.f32 %v1138, %v1103
        %v1155 = vmul.f32 %v1139, %v1102
        %v1156 = vmul.f32 %v1140, %v1103
        %v1157 = vmax.f32 %v1141, %v1142
        %v1158 = vrot.slane %v1157, 4
        %v1159 = vmax.f32 %v1157, %v1158
        %v1160 = vrot.slane %v1159, 2
        %v1161 = vmax.f32 %v1159, %v1160
        %v1162 = vrot.slane %v1161, 1
        %v1163 = vmax.f32 %v1161, %v1162
        %v1164 = vmax.f32 %v1143, %v1144
        %v1165 = vrot.slane %v1164, 4
        %v1166 = vmax.f32 %v1164, %v1165
        %v1167 = vrot.slane %v1166, 2
        %v1168 = vmax.f32 %v1166, %v1167
        %v1169 = vrot.slane %v1168, 1
        %v1170 = vmax.f32 %v1168, %v1169
        %v1171 = vmax.f32 %v1145, %v1146
        %v1172 = vrot.slane %v1171, 4
        %v1173 = vmax.f32 %v1171, %v1172
        %v1174 = vrot.slane %v1173, 2
        %v1175 = vmax.f32 %v1173, %v1174
        %v1176 = vrot.slane %v1175, 1
        %v1177 = vmax.f32 %v1175, %v1176
        %v1178 = vmax.f32 %v1147, %v1148
        %v1179 = vrot.slane %v1178, 4
        %v1180 = vmax.f32 %v1178, %v1179
        %v1181 = vrot.slane %v1180, 2
        %v1182 = vmax.f32 %v1180, %v1181
        %v1183 = vrot.slane %v1182, 1
        %v1184 = vmax.f32 %v1182, %v1183
        %v1185 = vmax.f32 %v1149, %v1150
        %v1186 = vrot.slane %v1185, 4
        %v1187 = vmax.f32 %v1185, %v1186
        %v1188 = vrot.slane %v1187, 2
        %v1189 = vmax.f32 %v1187, %v1188
        %v1190 = vrot.slane %v1189, 1
        %v1191 = vmax.f32 %v1189, %v1190
        %v1192 = vmax.f32 %v1151, %v1152
        %v1193 = vrot.slane %v1192, 4
        %v1194 = vmax.f32 %v1192, %v1193
        %v1195 = vrot.slane %v1194, 2
        %v1196 = vmax.f32 %v1194, %v1195
        %v1197 = vrot.slane %v1196, 1
        %v1198 = vmax.f32 %v1196, %v1197
        %v1199 = vmax.f32 %v1153, %v1154
        %v1200 = vrot.slane %v1199, 4
        %v1201 = vmax.f32 %v1199, %v1200
        %v1202 = vrot.slane %v1201, 2
        %v1203 = vmax.f32 %v1201, %v1202
        %v1204 = vrot.slane %v1203, 1
        %v1205 = vmax.f32 %v1203, %v1204
        %v1206 = vmax.f32 %v1155, %v1156
        %v1207 = vrot.slane %v1206, 4
        %v1208 = vmax.f32 %v1206, %v1207
        %v1209 = vrot.slane %v1208, 2
        %v1210 = vmax.f32 %v1208, %v1209
        %v1211 = vrot.slane %v1210, 1
        %v1212 = vmax.f32 %v1210, %v1211
        %v1213 = vld [vmem:[#allocation8] sm:$0xff]
        %v1214 = vld [vmem:[#allocation8 + $0x8] sm:$0xff]
        %v1215 = vld [vmem:[#allocation8 + $0x10] sm:$0xff]
        %v1216 = vld [vmem:[#allocation8 + $0x18] sm:$0xff]
        %v1217 = vld [vmem:[#allocation8 + $0x20] sm:$0xff]
        %v1218 = vld [vmem:[#allocation8 + $0x28] sm:$0xff]
        %v1219 = vld [vmem:[#allocation8 + $0x30] sm:$0xff]
        %v1220 = vld [vmem:[#allocation8 + $0x38] sm:$0xff]
        %v1221 = vld [vmem:[#allocation8 + $0x40] sm:$0xff]
        %v1222 = vld [vmem:[#allocation8 + $0x48] sm:$0xff]
        %v1223 = vld [vmem:[#allocation8 + $0x50] sm:$0xff]
        %v1224 = vld [vmem:[#allocation8 + $0x58] sm:$0xff]
        %v1225 = vld [vmem:[#allocation8 + $0x60] sm:$0xff]
        %v1226 = vld [vmem:[#allocation8 + $0x68] sm:$0xff]
        %v1227 = vld [vmem:[#allocation8 + $0x70] sm:$0xff]
        %v1228 = vld [vmem:[#allocation8 + $0x78] sm:$0xff]
        %v1229 = vld [vmem:[#allocation8 + $0x80] sm:$0x1]
        %v1230 = vlaneseq
        %v1231 = vshrl.u32 %v1230, 7
        %v1232 = vsub.s32 0, %v1231
        %v1233 = vrot.slane %v1229, %v1232
        %vm1242 = vcmask 1041409
        %v1243 = vsel %vm1242, %v1170, %v1163
        %vm1244 = vcmask 1042434
        %v1245 = vsel %vm1244, %v1177, %v1243
        %vm1246 = vcmask 1043459
        %v1247 = vsel %vm1246, %v1184, %v1245
        %vm1248 = vcmask 1044484
        %v1249 = vsel %vm1248, %v1191, %v1247
        %vm1250 = vcmask 1045509
        %v1251 = vsel %vm1250, %v1198, %v1249
        %vm1252 = vcmask 1046534
        %v1253 = vsel %vm1252, %v1205, %v1251
        %vm1254 = vcmask 1047559
        %v1255 = vsel %vm1254, %v1212, %v1253
        %1257 = vmatprep.subr.mxu0 0.0
        %1258 = vmatpush1.msra.mxu0 %v1228
        %1259 = vmatprep.subr.mxu0 0.0
        %1260 = vmatpush1.msra.mxu0 %v1227
        %1261 = vmatprep.subr.mxu0 0.0
        %1262 = vmatpush1.msra.mxu0 %v1226
        %1263 = vmatprep.subr.mxu0 0.0
        %1264 = vmatpush1.msra.mxu0 %v1225
        %1265 = vmatprep.subr.mxu0 0.0
        %1266 = vmatpush1.msra.mxu0 %v1224
        %1267 = vmatprep.subr.mxu0 0.0
        %1268 = vmatpush1.msra.mxu0 %v1223
        %1269 = vmatprep.subr.mxu0 0.0
        %1270 = vmatpush1.msra.mxu0 %v1222
        %1271 = vmatprep.subr.mxu0 0.0
        %1272 = vmatpush1.msra.mxu0 %v1221
        %1273 = vmatprep.subr.mxu0 0.0
        %1274 = vmatpush1.msra.mxu0 %v1220
        %1275 = vmatprep.subr.mxu0 0.0
        %1276 = vmatpush1.msra.mxu0 %v1219
        %1277 = vmatprep.subr.mxu0 0.0
        %1278 = vmatpush1.msra.mxu0 %v1218
        %1279 = vmatprep.subr.mxu0 0.0
        %1280 = vmatpush1.msra.mxu0 %v1217
        %1281 = vmatprep.subr.mxu0 0.0
        %1282 = vmatpush1.msra.mxu0 %v1216
        %1283 = vmatprep.subr.mxu0 0.0
        %1284 = vmatpush1.msra.mxu0 %v1215
        %1285 = vmatprep.subr.mxu0 0.0
        %1286 = vmatpush1.msra.mxu0 %v1214
        %1287 = vmatprep.subr.mxu0 0.0
        %1288 = vmatpush1.msra.mxu0 %v1213
        %1289 = vmatprep.subr.mxu0 0.0
        %1290 = vmatpush2.msra.mxu0 0.0
        %1291 = vmatprep.subr.mxu0 0.0
        %1292 = vmatpush2.msra.mxu0 0.0
        %1293 = vmatprep.subr.mxu0 0.0
        %1294 = vmatpush2.msra.mxu0 0.0
        %1295 = vmatprep.subr.mxu0 0.0
        %1296 = vmatpush2.msra.mxu0 0.0
        %1297 = vmatprep.subr.mxu0 0.0
        %1298 = vmatpush2.msra.mxu0 0.0
        %1299 = vmatprep.subr.mxu0 0.0
        %1300 = vmatpush2.msra.mxu0 0.0
        %1301 = vmatprep.subr.mxu0 0.0
        %1302 = vmatpush2.msra.mxu0 0.0
        %1303 = vmatprep.subr.mxu0 0.0
        %1304 = vmatpush2.msra.mxu0 0.0
        %1305 = vmatprep.subr.mxu0 0.0
        %1306 = vmatpush2.msra.mxu0 0.0
        %1307 = vmatprep.subr.mxu0 0.0
        %1308 = vmatpush2.msra.mxu0 0.0
        %1309 = vmatprep.subr.mxu0 0.0
        %1310 = vmatpush2.msra.mxu0 0.0
        %1311 = vmatprep.subr.mxu0 0.0
        %1312 = vmatpush2.msra.mxu0 0.0
        %1313 = vmatprep.subr.mxu0 0.0
        %1314 = vmatpush2.msra.mxu0 0.0
        %1315 = vmatprep.subr.mxu0 0.0
        %1316 = vmatpush2.msra.mxu0 0.0
        %1317 = vmatprep.subr.mxu0 0.0
        %1318 = vmatpush2.msra.mxu0 0.0
        %1319 = vmatprep.subr.mxu0 0.0
        %1320 = vmatpush2.msra.mxu0 0.0
        %1321 = vmatprep.mubr.f32.mxu0 0.0
        %1322 = vmatmul.mubr.f32.gmra.mxu0 %v1255
        %v1323 = vpop.f32.mrf.mxu0
        %v1324 = vadd.f32 %v1233, %v1323
        %v1325 = vpop.f32.mrf.mxu0
        %1326 = vdwg.mxu0
        %1327 = vst [vmem:[%s260] sm:$0xff] %v1324
        %s1328 = sand.u32 %s120, 1
        %s1329 = scalar_lea.sflag [#allocation4], %s1328
        %s1330 = sand.u32 %s120, 1
        %s1331 = smul.addr %s1330, 8
        %s1332 = scalar_lea.vmem [#allocation10], %s1331
        // Predicated region
        $region53: #{tpu_custom_call.1} parent=35 // pred_check
          %p1333 = pneg %p130
        $region54: #{tpu_custom_call.1} parent=35 // pred_check_branch
          %1335 = sbr.rel (%p1333) target = $region56
        $region55: #{tpu_custom_call.1} parent=35 // pred_region
          %s1337 = ssub.s32 128, 128
          %1338 = vsyncadd %s1329, %s1337
          %s1339 = smul.addr %s23, 128
          %s1340 = scalar_lea.hbm %s4, %s1339
          %s1342 = sshll.u32 %s1332, 4
          %s1343 = int_to_ptr.vmem [resolvable:$true] %s1342
          %1345 = dma.vmem_to_hbm [thread:$0]  %s1343, 128, %s1340, %s1329
        $region56: #{tpu_custom_call.1} parent=35 // pred_fallthru
          _
      $region36: #{tpu_custom_call.1} parent=5 // pred_fallthru
        _
      %p1346 = scmp.le.s32.totalorder 2, %s18
      // Predicated region
      $region57: #{tpu_custom_call.1} parent=5 // pred_check
        %p1347 = pneg %p1346
      $region58: #{tpu_custom_call.1} parent=5 // pred_check_branch
        %1349 = sbr.rel (%p1347) target = $region60
      $region59: #{tpu_custom_call.1} parent=5 // pred_region
        %s1350 = ssub.s32 %s18, 2
        // Predicated region
        $region61: #{tpu_custom_call.1} parent=59 // pred_check
          %p1351 = pneg %p136
        $region62: #{tpu_custom_call.1} parent=59 // pred_check_branch
          %1353 = sbr.rel (%p1351) target = $region64
        $region63: #{tpu_custom_call.1} parent=59 // pred_region
          %s1354 = sand.u32 %s121, 1
          %s1355 = scalar_lea.sflag [#allocation4], %s1354
          %s1356 = sand.u32 %s121, 1
          %s1357 = smul.addr %s1356, 8
          %s1358 = scalar_lea.vmem [#allocation10], %s1357
          %1359 = dma.done %s1355, 128
        $region64: #{tpu_custom_call.1} parent=59 // pred_fallthru
          _
      $region60: #{tpu_custom_call.1} parent=5 // pred_fallthru
        _
    $region6: #{tpu_custom_call.1} parent=1 // loop_footer
      %s22 = sadd.s32 1, %s18
    $region7: #{tpu_custom_call.1} parent=1 // loop_footer_branch
      %17 = sbr.rel target = $region3
    $region8: #{tpu_custom_call.1} parent=1 // loop_exit
      _
    %1360 = vsyncpa [#allocation3], 1
    %s1361 = scalar_lea.sflag [#allocation3], 1
    %1362 = vsyncpa %s1361, 1
    %1363 = vsyncpa [#allocation6], 1
    %1364 = vsyncpa [#allocation9], 1
    %1365 = vsyncpa [#allocation4], 1
    %s1366 = scalar_lea.sflag [#allocation4], 1
    %1367 = vsyncpa %s1366, 1

</llo_original>
